<compile_context>
chip_gen: v7x
topology: tpu7x:2x2x1
jax: 0.10.0
libtpu: 0.0.40
codegen_flags: <defaults>
</compile_context>

<pallas_src>
import math

import jax
import jax.numpy as jnp
from jax.experimental import pallas as pl
from jax.experimental.pallas import tpu as pltpu


def _round_up(x, m):
    return (x + m - 1) // m * m


def _sublane_multiple(dtype):
    itemsize = jnp.dtype(dtype).itemsize
    if itemsize >= 4:
        return 8
    if itemsize == 2:
        return 16
    return 32


def _pick_tile(dim_padded, target):
    """Largest multiple of 128 <= target that divides dim_padded (mult of 128)."""
    target = max(128, min(target, dim_padded))
    target = (target // 128) * 128
    for t in range(target, 127, -128):
        if dim_padded % t == 0:
            return t
    return 128


# ---------------------------------------------------------------------------
# Kernels
# ---------------------------------------------------------------------------

def _shared_lora_kernel(x_ref, w_ref, xa_ref, b_ref, o_ref, acc_ref):
    """Multi-K-step tile: f32 accumulator carried across the K grid axis.

    x_ref:  (tm, tk)  activation tile
    w_ref:  (tk, tn)  pre-transposed weight tile (W^T), lane-dense in N
    xa_ref: (tm, r)   precomputed scaling * (x @ lora_A^T) tile
    b_ref:  (r, tn)   pre-transposed lora_B tile (lora_B^T)
    o_ref:  (tm, tn)  output tile
    acc_ref:(tm, tn)  f32 accumulator scratch (persists across the K axis)
    """
    k = pl.program_id(2)

    @pl.when(k == 0)
    def _():
        acc_ref[...] = jnp.zeros_like(acc_ref)

    # Main-path partial sum: standard (M,K)x(K,N) contraction on the MXU.
    acc_ref[...] += jnp.dot(x_ref[...], w_ref[...],
                            preferred_element_type=jnp.float32)

    @pl.when(k == pl.num_programs(2) - 1)
    def _():
        # LoRA up-projection added once per (i, j) tile (r << N => ~free).
        lora = jnp.dot(xa_ref[...], b_ref[...],
                       preferred_element_type=jnp.float32)
        o_ref[...] = (acc_ref[...] + lora).astype(o_ref.dtype)


def _shared_lora_kernel_single_k(x_ref, w_ref, xa_ref, b_ref, o_ref):
    """Single-K-step tile: no accumulator scratch / extra VMEM round trip."""
    main = jnp.dot(x_ref[...], w_ref[...], preferred_element_type=jnp.float32)
    lora = jnp.dot(xa_ref[...], b_ref[...], preferred_element_type=jnp.float32)
    o_ref[...] = (main + lora).astype(o_ref.dtype)


# ---------------------------------------------------------------------------
# One-time (load-time) parameter preparation -- NOT on the per-call hot path.
# ---------------------------------------------------------------------------

def prepare_shared_lora_params(weight, lora_B, compute_dtype=None):
    """Transpose + 128-pad the shared weight and lora_B once at model load.

    weight: (out_features, in_features)  -> returns (Kp, Np)  = W^T zero-padded
    lora_B: (out_features, r)            -> returns (r,  Np)  = lora_B^T padded
    compute_dtype: optional cast (e.g. jnp.bfloat16 to run the MXU natively
                   on v6e / v7x; v7x has no int MXU path, so quantized weights
                   must dequantize to bf16/fp8 anyway).
    """
    N, K = weight.shape
    Kp = _round_up(K, 128)
    Np = _round_up(N, 128)
    w_t = jnp.swapaxes(weight, 0, 1)           # (K, N)
    b_t = jnp.swapaxes(lora_B, 0, 1)           # (r, N)
    if (Kp, Np) != (K, N):
        w_t = jnp.pad(w_t, ((0, Kp - K), (0, Np - N)))
    if Np != N:
        b_t = jnp.pad(b_t, ((0, 0), (0, Np - N)))
    if compute_dtype is not None:
        w_t = w_t.astype(compute_dtype)
        b_t = b_t.astype(compute_dtype)
    return w_t, b_t


# ---------------------------------------------------------------------------
# Forward
# ---------------------------------------------------------------------------

def shared_lora_linear(x, weight_t, lora_A, lora_B_t, scaling, *,
                       out_features=None,
                       tm=1024, tn=1024, tk=1024,
                       vmem_budget_bytes=44 * 1024 * 1024):
    """y = x @ W.T + scaling * (x @ lora_A.T) @ lora_B.T

    x:        (..., in_features)
    weight_t: (Kp, Np)  pre-transposed, 128-padded main weight (see
              prepare_shared_lora_params)
    lora_A:   (r, in_features)
    lora_B_t: (r, Np)   pre-transposed, 128-padded lora_B
    """
    lead = x.shape[:-1]
    K = x.shape[-1]
    M = int(math.prod(lead)) if lead else 1

    Kp, Np = weight_t.shape
    assert Kp % 128 == 0 and Np % 128 == 0 and Kp >= K, \
        "weight_t must come from prepare_shared_lora_params"
    r = lora_A.shape[0]
    N = Np if out_features is None else int(out_features)

    in_dtype = weight_t.dtype          # compute dtype of the MXU operands
    out_dtype = x.dtype
    in_bytes = jnp.dtype(in_dtype).itemsize
    out_bytes = jnp.dtype(out_dtype).itemsize

    x2 = x.reshape(M, K)

    # Tiny LoRA down-projection (M, r): computed once (NOT per K-tile) with the
    # scaling folded in, so the kernel epilogue is a single small matmul + add.
    xa = (jnp.asarray(scaling, jnp.float32) *
          jnp.einsum("mk,rk->mr", x2, lora_A,
                     preferred_element_type=jnp.float32)).astype(in_dtype)

    if x2.dtype != in_dtype:
        x2 = x2.astype(in_dtype)
    if lora_B_t.dtype != in_dtype:
        lora_B_t = lora_B_t.astype(in_dtype)

    # ---- Tile selection: divisors of the 128-padded dims, dtype-aware tm. ----
    sub = _sublane_multiple(in_dtype)
    tn = _pick_tile(Np, tn)
    tk = _pick_tile(Kp, tk)
    tm = max(sub, (min(tm, _round_up(M, sub)) // sub) * sub)

    # v7x has 2 TensorCores: if both parallel grid axes collapse to one block,
    # split N so the grid can shard across cores (no-op on v5e/v6e).
    if _round_up(M, tm) // tm == 1 and Np // tn == 1 and Np >= 256:
        tn = _pick_tile(Np, Np // 2)

    # Fit the per-step working set in the VMEM budget (double buffers + f32 acc).
    def _fp(tm_, tn_, tk_):
        multi_k = (Kp // tk_) > 1
        f = 2 * tm_ * tk_ * in_bytes          # x double buffer
        f += 2 * tk_ * tn_ * in_bytes         # weight double buffer
        f += 2 * tm_ * tn_ * out_bytes        # output double buffer
        f += 2 * tm_ * r * in_bytes + 2 * r * tn_ * in_bytes   # LoRA tiles
        if multi_k:
            f += tm_ * tn_ * 4                # f32 accumulator scratch
        return f

    while _fp(tm, tn, tk) > vmem_budget_bytes and tk > 256:
        tk = _pick_tile(Kp, tk // 2)
    while _fp(tm, tn, tk) > vmem_budget_bytes and tn > 256:
        tn = _pick_tile(Np, tn // 2)
    while _fp(tm, tn, tk) > vmem_budget_bytes and tm > 256:
        tm = max(sub, ((tm // 2) // sub) * sub)

    Mp = _round_up(M, tm)
    grid_m, grid_n, grid_k = Mp // tm, Np // tn, Kp // tk

    # Only the (cheap) activation-side arrays ever need per-call padding; the
    # big weight was padded once at load time.
    if (Mp, Kp) != (M, K):
        x2 = jnp.pad(x2, ((0, Mp - M), (0, Kp - K)))
    if Mp != M:
        xa = jnp.pad(xa, ((0, Mp - M), (0, 0)))

    footprint = _fp(tm, tn, tk)
    vmem_limit = int(max(footprint + (8 << 20), 32 << 20))

    if grid_k == 1:
        # No K reduction to carry: skip the accumulator scratch entirely.
        w_map = lambda i, j: (0, j)
        w_spec = pl.BlockSpec((tk, tn), w_map)
        if grid_m == 1 and grid_n >= 3:
            # Decode / small-M: pure weight streaming -> deeper weight buffer.
            w_spec = pl.BlockSpec((tk, tn), w_map, pipeline_mode=pl.Buffered(3))
        out = pl.pallas_call(
            _shared_lora_kernel_single_k,
            out_shape=jax.ShapeDtypeStruct((Mp, Np), out_dtype),
            grid_spec=pltpu.PrefetchScalarGridSpec(
                num_scalar_prefetch=0,
                grid=(grid_m, grid_n),
                in_specs=[
                    pl.BlockSpec((tm, tk), lambda i, j: (i, 0)),   # x
                    w_spec,                                        # W^T
                    pl.BlockSpec((tm, r), lambda i, j: (i, 0)),    # xa
                    pl.BlockSpec((r, tn), lambda i, j: (0, j)),    # lora_B^T
                ],
                out_specs=pl.BlockSpec((tm, tn), lambda i, j: (i, j)),
            ),
            compiler_params=pltpu.CompilerParams(
                dimension_semantics=("parallel", "parallel"),
                vmem_limit_bytes=vmem_limit,
            ),
        )(x2, weight_t, xa, lora_B_t)
    else:
        w_map = lambda i, j, k: (k, j)
        w_spec = pl.BlockSpec((tk, tn), w_map)
        if grid_m == 1 and grid_n * grid_k >= 3:
            w_spec = pl.BlockSpec((tk, tn), w_map, pipeline_mode=pl.Buffered(3))
        out = pl.pallas_call(
            _shared_lora_kernel,
            out_shape=jax.ShapeDtypeStruct((Mp, Np), out_dtype),
            grid_spec=pltpu.PrefetchScalarGridSpec(
                num_scalar_prefetch=0,
                grid=(grid_m, grid_n, grid_k),
                in_specs=[
                    pl.BlockSpec((tm, tk), lambda i, j, k: (i, k)),   # x
                    w_spec,                                           # W^T
                    pl.BlockSpec((tm, r), lambda i, j, k: (i, 0)),    # xa
                    pl.BlockSpec((r, tn), lambda i, j, k: (0, j)),    # lora_B^T
                ],
                out_specs=pl.BlockSpec((tm, tn), lambda i, j, k: (i, j)),
                scratch_shapes=[pltpu.VMEM((tm, tn), jnp.float32)],
            ),
            compiler_params=pltpu.CompilerParams(
                dimension_semantics=("parallel", "parallel", "arbitrary"),
                vmem_limit_bytes=vmem_limit,
            ),
        )(x2, weight_t, xa, lora_B_t)

    return out[:M, :N].reshape(*lead, N)


# ---------------------------------------------------------------------------
# Demo / correctness check
# ---------------------------------------------------------------------------

if __name__ == "__main__":
    # Small shapes consistent with the module's forward (LoRA branch).
    Bsz, T = 2, 8
    in_features, out_features = 32, 32
    r, alpha = 4, 8
    scaling = alpha / r          # 2.0 ; dropout = 0.0 -> identity at inference

    key = jax.random.PRNGKey(0)
    k_x, k_w, k_a, k_b = jax.random.split(key, 4)

    x = jax.random.normal(k_x, (Bsz, T, in_features), dtype=jnp.float32)
    weight = jax.random.normal(k_w, (out_features, in_features),
                               dtype=jnp.float32) * 0.1
    bound_a = 1.0 / math.sqrt(in_features)
    lora_A = jax.random.uniform(k_a, (r, in_features), dtype=jnp.float32,
                                minval=-bound_a, maxval=bound_a)
    # Module inits lora_B to zeros; use small random values so the LoRA path is
    # actually exercised/verified.
    lora_B = jax.random.normal(k_b, (out_features, r), dtype=jnp.float32) * 0.05

    # One-time (load-time) weight prep: transpose + 128-pad.
    w_t, b_t = prepare_shared_lora_params(weight, lora_B)

    y = shared_lora_linear(x, w_t, lora_A, b_t, scaling,
                           out_features=out_features)
    y = jax.block_until_ready(y)

    # Pure-JAX reference of the PyTorch forward semantics.
    y_ref = (jnp.einsum("btk,nk->btn", x, weight)
             + scaling * jnp.einsum("btr,nr->btn",
                                    jnp.einsum("btk,rk->btr", x, lora_A),
                                    lora_B))
    assert jnp.allclose(y, y_ref, atol=1e-4, rtol=1e-4), "mismatch vs reference"

    # Second check: exercise the multi-K accumulator path and 128-unaligned K.
    K2, N2, r2 = 320, 384, 8
    k_x2, k_w2, k_a2, k_b2 = jax.random.split(jax.random.PRNGKey(0), 4)
    x2 = jax.random.normal(k_x2, (2, 128, K2), dtype=jnp.float32)
    w2 = jax.random.normal(k_w2, (N2, K2), dtype=jnp.float32) * 0.05
    a2 = jax.random.normal(k_a2, (r2, K2), dtype=jnp.float32) * 0.05
    b2 = jax.random.normal(k_b2, (N2, r2), dtype=jnp.float32) * 0.05
    w2_t, b2_t = prepare_shared_lora_params(w2, b2)
    y2 = shared_lora_linear(x2, w2_t, a2, b2_t, 2.0, out_features=N2,
                            tm=128, tn=128, tk=128)
    y2 = jax.block_until_ready(y2)
    y2_ref = (jnp.einsum("btk,nk->btn", x2, w2)
              + 2.0 * jnp.einsum("btr,nr->btn",
                                 jnp.einsum("btk,rk->btr", x2, a2), b2))
    assert jnp.allclose(y2, y2_ref, atol=1e-3, rtol=1e-3), "multi-K mismatch"

    print("KERNEL_OK")
</pallas_src>

<mosaic_0001>
module attributes {stable_mosaic.version = 11 : i64} {
  func.func @_shared_lora_kernel_single_k(%arg0: i32, %arg1: i32, %arg2: memref<16x128xf32, #tpu.memory_space<vmem>>, %arg3: memref<128x128xf32, #tpu.memory_space<vmem>>, %arg4: memref<16x4xf32, #tpu.memory_space<vmem>>, %arg5: memref<4x128xf32, #tpu.memory_space<vmem>>, %arg6: memref<16x128xf32, #tpu.memory_space<vmem>>) attributes {dimension_semantics = [#tpu.dimension_semantics<parallel>, #tpu.dimension_semantics<parallel>], iteration_bounds = array<i64: 1, 1>, scalar_prefetch = 0 : i64, scratch_operands = 0 : i64, tpu.core_type = #tpu.core_type<tc>, window_params = [{transform_indices = @transform_0, window_bounds = array<i64: 16, 128>}, {transform_indices = @transform_1, window_bounds = array<i64: 128, 128>}, {transform_indices = @transform_2, window_bounds = array<i64: 16, 4>}, {transform_indices = @transform_3, window_bounds = array<i64: 4, 128>}, {transform_indices = @transform_4, window_bounds = array<i64: 16, 128>}]} {
    %c0 = arith.constant 0 : index
    %c0_0 = arith.constant 0 : index
    %0 = vector.load %arg2[%c0, %c0_0] : memref<16x128xf32, #tpu.memory_space<vmem>>, vector<16x128xf32>
    %c0_1 = arith.constant 0 : index
    %c0_2 = arith.constant 0 : index
    %1 = vector.load %arg3[%c0_1, %c0_2] : memref<128x128xf32, #tpu.memory_space<vmem>>, vector<128x128xf32>
    %cst = arith.constant dense<0.000000e+00> : vector<16x128xf32>
    %2 = tpu.matmul %0, %1, %cst {dimension_numbers = #tpu.dot_dimension_numbers<[1], [0], [0], [1], [0, 0, 1, 1], [], []>} : vector<16x128xf32>, vector<128x128xf32>, vector<16x128xf32> -> vector<16x128xf32>
    %c0_3 = arith.constant 0 : index
    %c0_4 = arith.constant 0 : index
    %3 = vector.load %arg4[%c0_3, %c0_4] : memref<16x4xf32, #tpu.memory_space<vmem>>, vector<16x4xf32>
    %c0_5 = arith.constant 0 : index
    %c0_6 = arith.constant 0 : index
    %4 = vector.load %arg5[%c0_5, %c0_6] : memref<4x128xf32, #tpu.memory_space<vmem>>, vector<4x128xf32>
    %cst_7 = arith.constant dense<0.000000e+00> : vector<16x128xf32>
    %5 = tpu.matmul %3, %4, %cst_7 {dimension_numbers = #tpu.dot_dimension_numbers<[1], [0], [0], [1], [0, 0, 1, 1], [], []>} : vector<16x4xf32>, vector<4x128xf32>, vector<16x128xf32> -> vector<16x128xf32>
    %6 = arith.addf %2, %5 : vector<16x128xf32>
    %c0_8 = arith.constant 0 : index
    %c0_9 = arith.constant 0 : index
    %7 = vector.load %arg6[%c0_8, %c0_9] : memref<16x128xf32, #tpu.memory_space<vmem>>, vector<16x128xf32>
    tpu.vector_store %arg6[%c0_8, %c0_9], %6 {strides = array<i32>} : memref<16x128xf32, #tpu.memory_space<vmem>>, vector<16x128xf32>,
    return
  }
  func.func @transform_0(%arg0: i32, %arg1: i32) -> (i32, i32) {
    %c0_i32 = arith.constant 0 : i32
    %c0_i32_0 = arith.constant 0 : i32
    return %arg0, %c0_i32 : i32, i32
  }
  func.func @transform_1(%arg0: i32, %arg1: i32) -> (i32, i32) {
    %c0_i32 = arith.constant 0 : i32
    %c0_i32_0 = arith.constant 0 : i32
    return %c0_i32, %arg1 : i32, i32
  }
  func.func @transform_2(%arg0: i32, %arg1: i32) -> (i32, i32) {
    %c0_i32 = arith.constant 0 : i32
    %c0_i32_0 = arith.constant 0 : i32
    return %arg0, %c0_i32 : i32, i32
  }
  func.func @transform_3(%arg0: i32, %arg1: i32) -> (i32, i32) {
    %c0_i32 = arith.constant 0 : i32
    %c0_i32_0 = arith.constant 0 : i32
    return %c0_i32, %arg1 : i32, i32
  }
  func.func @transform_4(%arg0: i32, %arg1: i32) -> (i32, i32) {
    %c0_i32 = arith.constant 0 : i32
    return %arg0, %arg1 : i32, i32
  }
}

</mosaic_0001>

<llo_original>
// kernel: tpu_custom_call.1
$region0: #{tpu_custom_call.1}
  #allocation0 [shape = 'u32[]', space=smem, size = 0x4, offset = 0x4, fixed_abs, tag = 'smem constant byte address 0x4 - core index']
  #allocation1 [shape = 'u32[144,128]{1,0:T(1,128)}', space=vmem, size = 0x12000, scoped, tag = 'internal scratch']
  %s0 = inlined_call_operand.vmem [shape: f32[16,128], index: 0, kind: input, shape index: {}]
  %s1 = inlined_call_operand.hbm [shape: f32[128,128], index: 1, kind: input, shape index: {}]
  %s2 = inlined_call_operand.vmem [shape: f32[16,4], index: 2, kind: input, shape index: {}]
  %s3 = inlined_call_operand.vmem [shape: f32[4,128], index: 3, kind: input, shape index: {}]
  %s4 = inlined_call_operand.hbm [shape: f32[16,128], index: 4, kind: output, shape index: {}]
  %s5 = sld [smem:[#allocation0]]
  $region30: #{tpu_custom_call.1} parent=0
    _
  %s7 = ssub.s32 1, %s5
  %s8 = scalar_select 0, %s7, %s5
  $region1: #{tpu_custom_call.1} parent=0
    #allocation2 [shape = 'u8[65536]{0}', space=vmem, size = 0x10000, scoped, tag = 'input window, operand 1, single buffered']
    #allocation3 [shape = 's32[1]{0}', space=sflag, size = 0x4, scoped, tag = 'scoped memory for tpu_custom_call.1']
    #allocation4 [shape = 's32[1]{0}', space=sflag, size = 0x4, scoped, tag = 'scoped memory for tpu_custom_call.1']
    #allocation5 [shape = 'u8[8192]{0}', space=vmem, size = 0x2000, scoped, tag = 'output window, operand 0, single buffered']
    %9 = vsyncpa [#allocation3], 0
    %10 = vsyncpa [#allocation4], 0
    // Predicated region
    $region2: #{tpu_custom_call.1} parent=1 // pred_check
      _
    $region3: #{tpu_custom_call.1} parent=1 // pred_check_branch
      %12 = sbr.rel (0) target = $region5
    $region4: #{tpu_custom_call.1} parent=1 // pred_region
      _
    $region5: #{tpu_custom_call.1} parent=1 // pred_fallthru
      _
    // Predicated region
    $region6: #{tpu_custom_call.1} parent=1 // pred_check
      _
    $region7: #{tpu_custom_call.1} parent=1 // pred_check_branch
      %14 = sbr.rel (0) target = $region9
    $region8: #{tpu_custom_call.1} parent=1 // pred_region
      %s16 = ssub.s32 2048, 2048
      %17 = vsyncadd [#allocation3], %s16
      %s18 = sshll.u32 [#allocation2], 4
      %s19 = int_to_ptr.vmem [resolvable:$true] %s18
      %24 = dma.hbm_to_vmem [thread:$0]  %s1, 2048, %s19, [#allocation3], 128, 128, 8
    $region9: #{tpu_custom_call.1} parent=1 // pred_fallthru
      _
    // Predicated region
    $region10: #{tpu_custom_call.1} parent=1 // pred_check
      _
    $region11: #{tpu_custom_call.1} parent=1 // pred_check_branch
      %26 = sbr.rel (0) target = $region13
    $region12: #{tpu_custom_call.1} parent=1 // pred_region
      _
    $region13: #{tpu_custom_call.1} parent=1 // pred_fallthru
      _
    // Predicated region
    $region14: #{tpu_custom_call.1} parent=1 // pred_check
      _
    $region15: #{tpu_custom_call.1} parent=1 // pred_check_branch
      %28 = sbr.rel (0) target = $region17
    $region16: #{tpu_custom_call.1} parent=1 // pred_region
      _
    $region17: #{tpu_custom_call.1} parent=1 // pred_fallthru
      _
    // Predicated region
    $region18: #{tpu_custom_call.1} parent=1 // pred_check
      _
    $region19: #{tpu_custom_call.1} parent=1 // pred_check_branch
      %30 = sbr.rel (0) target = $region21
    $region20: #{tpu_custom_call.1} parent=1 // pred_region
      %31 = dma.done [#allocation3], 2048
    $region21: #{tpu_custom_call.1} parent=1 // pred_fallthru
      _
    %v32 = vld [vmem:[%s0] sm:$0xff]
    %v33 = vld [vmem:[%s0 + $0x8] sm:$0xff]
    %v34 = vld [vmem:[#allocation2] sm:$0xff]
    %v35 = vld [vmem:[#allocation2 + $0x8] sm:$0xff]
    %v36 = vld [vmem:[#allocation2 + $0x10] sm:$0xff]
    %v37 = vld [vmem:[#allocation2 + $0x18] sm:$0xff]
    %v38 = vld [vmem:[#allocation2 + $0x20] sm:$0xff]
    %v39 = vld [vmem:[#allocation2 + $0x28] sm:$0xff]
    %v40 = vld [vmem:[#allocation2 + $0x30] sm:$0xff]
    %v41 = vld [vmem:[#allocation2 + $0x38] sm:$0xff]
    %v42 = vld [vmem:[#allocation2 + $0x40] sm:$0xff]
    %v43 = vld [vmem:[#allocation2 + $0x48] sm:$0xff]
    %v44 = vld [vmem:[#allocation2 + $0x50] sm:$0xff]
    %v45 = vld [vmem:[#allocation2 + $0x58] sm:$0xff]
    %v46 = vld [vmem:[#allocation2 + $0x60] sm:$0xff]
    %v47 = vld [vmem:[#allocation2 + $0x68] sm:$0xff]
    %v48 = vld [vmem:[#allocation2 + $0x70] sm:$0xff]
    %v49 = vld [vmem:[#allocation2 + $0x78] sm:$0xff]
    %v50 = vld [vmem:[%s2] sm:$0xff]
    %v51 = vld [vmem:[%s2 + $0x8] sm:$0xff]
    %v52 = vld [vmem:[%s3] sm:$0xf]
    %vm53 = vcmask 31744
    %v55 = vsel %vm53, %v50, 0
    %v58 = vsel %vm53, %v51, 0
    %vm60 = vcmask 1043456
    %v62 = vsel %vm60, %v52, 0
    %64 = vmatprep.subr.mxu0 0.0
    %65 = vmatpush1.msra.mxu0 %v62
    %66 = vmatprep.subr.mxu0 0.0
    %67 = vmatpush1.msra.mxu0 0.0
    %68 = vmatprep.subr.mxu0 0.0
    %69 = vmatpush1.msra.mxu0 0.0
    %70 = vmatprep.subr.mxu0 0.0
    %71 = vmatpush1.msra.mxu0 0.0
    %72 = vmatprep.subr.mxu0 0.0
    %73 = vmatpush1.msra.mxu0 0.0
    %74 = vmatprep.subr.mxu0 0.0
    %75 = vmatpush1.msra.mxu0 0.0
    %76 = vmatprep.subr.mxu0 0.0
    %77 = vmatpush1.msra.mxu0 0.0
    %78 = vmatprep.subr.mxu0 0.0
    %79 = vmatpush1.msra.mxu0 0.0
    %80 = vmatprep.subr.mxu0 0.0
    %81 = vmatpush1.msra.mxu0 0.0
    %82 = vmatprep.subr.mxu0 0.0
    %83 = vmatpush1.msra.mxu0 0.0
    %84 = vmatprep.subr.mxu0 0.0
    %85 = vmatpush1.msra.mxu0 0.0
    %86 = vmatprep.subr.mxu0 0.0
    %87 = vmatpush1.msra.mxu0 0.0
    %88 = vmatprep.subr.mxu0 0.0
    %89 = vmatpush1.msra.mxu0 0.0
    %90 = vmatprep.subr.mxu0 0.0
    %91 = vmatpush1.msra.mxu0 0.0
    %92 = vmatprep.subr.mxu0 0.0
    %93 = vmatpush1.msra.mxu0 0.0
    %94 = vmatprep.subr.mxu0 0.0
    %95 = vmatpush1.msra.mxu0 0.0
    %96 = vmatprep.subr.mxu0 0.0
    %97 = vmatpush1.msra.mxu0 0.0
    %98 = vmatprep.subr.mxu0 0.0
    %99 = vmatpush1.msra.mxu0 0.0
    %100 = vmatprep.subr.mxu0 0.0
    %101 = vmatpush1.msra.mxu0 0.0
    %102 = vmatprep.subr.mxu0 0.0
    %103 = vmatpush1.msra.mxu0 0.0
    %104 = vmatprep.subr.mxu0 0.0
    %105 = vmatpush1.msra.mxu0 0.0
    %106 = vmatprep.subr.mxu0 0.0
    %107 = vmatpush1.msra.mxu0 0.0
    %108 = vmatprep.subr.mxu0 0.0
    %109 = vmatpush1.msra.mxu0 0.0
    %110 = vmatprep.subr.mxu0 0.0
    %111 = vmatpush1.msra.mxu0 0.0
    %112 = vmatprep.subr.mxu0 0.0
    %113 = vmatpush1.msra.mxu0 0.0
    %114 = vmatprep.subr.mxu0 0.0
    %115 = vmatpush1.msra.mxu0 0.0
    %116 = vmatprep.subr.mxu0 0.0
    %117 = vmatpush1.msra.mxu0 0.0
    %118 = vmatprep.subr.mxu0 0.0
    %119 = vmatpush1.msra.mxu0 0.0
    %120 = vmatprep.subr.mxu0 0.0
    %121 = vmatpush1.msra.mxu0 0.0
    %122 = vmatprep.subr.mxu0 0.0
    %123 = vmatpush1.msra.mxu0 0.0
    %124 = vmatprep.subr.mxu0 0.0
    %125 = vmatpush1.msra.mxu0 0.0
    %126 = vmatprep.subr.mxu0 0.0
    %127 = vmatpush1.msra.mxu0 0.0
    %128 = vmatprep.mubr.f32.mxu0 0.0
    %129 = vmatmul.mubr.f32.gmra.mrb[0].mxu0 %v55
    %v130 = vpop.f32.mrb[0].mxu0
    %v131 = vadd.f32 0.0, %v130
    %v132 = vpop.f32.mrb[0].mxu0
    %133 = vmatprep.mubr.f32.mxu0 0.0
    %134 = vmatmul.mubr.f32.gmra.mrb[0].mxu0 %v58
    %v135 = vpop.f32.mrb[0].mxu0
    %v136 = vadd.f32 0.0, %v135
    %v137 = vpop.f32.mrb[0].mxu0
    %138 = vdwg.mxu0
    %139 = vmatprep.subr.mxu0 0.0
    %140 = vmatpush1.msra.mxu0 %v34
    %141 = vmatprep.subr.mxu0 0.0
    %142 = vmatpush1.msra.mxu0 %v35
    %143 = vmatprep.subr.mxu0 0.0
    %144 = vmatpush1.msra.mxu0 %v36
    %145 = vmatprep.subr.mxu0 0.0
    %146 = vmatpush1.msra.mxu0 %v37
    %147 = vmatprep.subr.mxu0 0.0
    %148 = vmatpush1.msra.mxu0 %v38
    %149 = vmatprep.subr.mxu0 0.0
    %150 = vmatpush1.msra.mxu0 %v39
    %151 = vmatprep.subr.mxu0 0.0
    %152 = vmatpush1.msra.mxu0 %v40
    %153 = vmatprep.subr.mxu0 0.0
    %154 = vmatpush1.msra.mxu0 %v41
    %155 = vmatprep.subr.mxu0 0.0
    %156 = vmatpush1.msra.mxu0 %v42
    %157 = vmatprep.subr.mxu0 0.0
    %158 = vmatpush1.msra.mxu0 %v43
    %159 = vmatprep.subr.mxu0 0.0
    %160 = vmatpush1.msra.mxu0 %v44
    %161 = vmatprep.subr.mxu0 0.0
    %162 = vmatpush1.msra.mxu0 %v45
    %163 = vmatprep.subr.mxu0 0.0
    %164 = vmatpush1.msra.mxu0 %v46
    %165 = vmatprep.subr.mxu0 0.0
    %166 = vmatpush1.msra.mxu0 %v47
    %167 = vmatprep.subr.mxu0 0.0
    %168 = vmatpush1.msra.mxu0 %v48
    %169 = vmatprep.subr.mxu0 0.0
    %170 = vmatpush1.msra.mxu0 %v49
    %171 = vmatprep.subr.mxu0 0.0
    %172 = vmatpush1.msra.mxu0 0.0
    %173 = vmatprep.subr.mxu0 0.0
    %174 = vmatpush1.msra.mxu0 0.0
    %175 = vmatprep.subr.mxu0 0.0
    %176 = vmatpush1.msra.mxu0 0.0
    %177 = vmatprep.subr.mxu0 0.0
    %178 = vmatpush1.msra.mxu0 0.0
    %179 = vmatprep.subr.mxu0 0.0
    %180 = vmatpush1.msra.mxu0 0.0
    %181 = vmatprep.subr.mxu0 0.0
    %182 = vmatpush1.msra.mxu0 0.0
    %183 = vmatprep.subr.mxu0 0.0
    %184 = vmatpush1.msra.mxu0 0.0
    %185 = vmatprep.subr.mxu0 0.0
    %186 = vmatpush1.msra.mxu0 0.0
    %187 = vmatprep.subr.mxu0 0.0
    %188 = vmatpush1.msra.mxu0 0.0
    %189 = vmatprep.subr.mxu0 0.0
    %190 = vmatpush1.msra.mxu0 0.0
    %191 = vmatprep.subr.mxu0 0.0
    %192 = vmatpush1.msra.mxu0 0.0
    %193 = vmatprep.subr.mxu0 0.0
    %194 = vmatpush1.msra.mxu0 0.0
    %195 = vmatprep.subr.mxu0 0.0
    %196 = vmatpush1.msra.mxu0 0.0
    %197 = vmatprep.subr.mxu0 0.0
    %198 = vmatpush1.msra.mxu0 0.0
    %199 = vmatprep.subr.mxu0 0.0
    %200 = vmatpush1.msra.mxu0 0.0
    %201 = vmatprep.subr.mxu0 0.0
    %202 = vmatpush1.msra.mxu0 0.0
    %203 = vmatprep.mubr.f32.mxu0 0.0
    %204 = vmatmul.mubr.f32.gmra.mrb[0].mxu0 %v32
    %v205 = vpop.f32.mrb[0].mxu0
    %v206 = vadd.f32 %v131, %v205
    %v207 = vpop.f32.mrb[0].mxu0
    %208 = vmatprep.mubr.f32.mxu0 0.0
    %209 = vmatmul.mubr.f32.gmra.mrb[0].mxu0 %v33
    %v210 = vpop.f32.mrb[0].mxu0
    %v211 = vadd.f32 %v136, %v210
    %v212 = vpop.f32.mrb[0].mxu0
    %213 = vdwg.mxu0
    %214 = vst [vmem:[#allocation5] sm:$0xff] %v206
    %215 = vst [vmem:[#allocation5 + $0x8] sm:$0xff] %v211
    // Predicated region
    $region22: #{tpu_custom_call.1} parent=1 // pred_check
      _
    $region23: #{tpu_custom_call.1} parent=1 // pred_check_branch
      %217 = sbr.rel (0) target = $region25
    $region24: #{tpu_custom_call.1} parent=1 // pred_region
      %s219 = ssub.s32 256, 256
      %220 = vsyncadd [#allocation4], %s219
      %s221 = sshll.u32 [#allocation5], 4
      %s222 = int_to_ptr.vmem [resolvable:$true] %s221
      %227 = dma.vmem_to_hbm [thread:$0]  %s222, 256, %s4, [#allocation4], 128, 128, 8
    $region25: #{tpu_custom_call.1} parent=1 // pred_fallthru
      _
    // Predicated region
    $region26: #{tpu_custom_call.1} parent=1 // pred_check
      _
    $region27: #{tpu_custom_call.1} parent=1 // pred_check_branch
      %229 = sbr.rel (0) target = $region29
    $region28: #{tpu_custom_call.1} parent=1 // pred_region
      %230 = dma.done [#allocation4], 256
    $region29: #{tpu_custom_call.1} parent=1 // pred_fallthru
      _
    %231 = vsyncpa [#allocation3], 1
    %232 = vsyncpa [#allocation4], 1

</llo_original>
